<compile_context>
chip_gen: v6e
topology: v6e:2x2x1
jax: 0.10.0
libtpu: 0.0.40
codegen_flags: <defaults>
</compile_context>

<pallas_src>
import functools

import jax
import jax.numpy as jnp
from jax.experimental import pallas as pl
from jax.experimental.pallas import tpu as pltpu


_ROWS_PER_TILE = 2048                   # 2048 x 512 x 4 B = 4 MiB per f32 array tile
_VMEM_LIMIT_BYTES = 32 * 1024 * 1024    # 3 arrays x 2 bufs x 4 MiB = 24 MiB < 32 MiB


def _round_up(n, m):
    return ((n + m - 1) // m) * m


def _qfl_kernel(inv_ref, x_ref, t_ref, o_ref, *, beta):
    """Elementwise QFL on a (tr, lane) tile. Pure VPU/EUP work.

    EUP per element: one exp (shared), one approx reciprocal, one log1p.
    beta==2 -> d*d on the VPU instead of generic pow (exp+log on EUP).
    """
    x = x_ref[...].astype(jnp.float32)
    t = t_ref[...].astype(jnp.float32)

    # e = exp(-|x|), shared by the stable sigmoid and stable BCE-with-logits.
    e = jnp.exp(-jnp.abs(x))
    # approx reciprocal keeps the single EUP slot under the HBM roofline on v7x.
    inv_ope = pl.reciprocal(1.0 + e, approx=True)        # 1 / (1 + exp(-|x|))
    pred_sigmoid = jnp.where(x >= 0.0, inv_ope, e * inv_ope)

    d = pred_sigmoid - t
    if beta == 2.0:
        scale = d * d
    elif beta == 1.0:
        scale = jnp.abs(d)
    elif float(beta).is_integer() and beta > 0:
        ad = jnp.abs(d)
        scale = ad
        for _ in range(int(beta) - 1):
            scale = scale * ad
    else:
        scale = jnp.power(jnp.abs(d), beta)

    # binary_cross_entropy_with_logits (reduction='none'), stable form:
    #   max(x, 0) - x*t + log1p(exp(-|x|))
    bce = jnp.maximum(x, 0.0) - x * t + jnp.log1p(e)

    o_ref[...] = (bce * scale * inv_ref[0]).astype(o_ref.dtype)


def _pick_tile_rows(rows):
    """Tile rows: big (amortize per-step overhead) but >=2 grid steps when possible."""
    if rows <= 8:
        return rows  # block == full dim (always legal)
    half = _round_up(pl.cdiv(rows, 2), 8)
    return min(_ROWS_PER_TILE, half)


def _run_kernel(xf, tf, inv_norm, beta, out_dtype):
    rows, lane = xf.shape
    tr = _pick_tile_rows(rows)
    grid = pl.cdiv(rows, tr)          # partial last block is clipped/masked by Pallas

    n = rows * lane
    bytes_accessed = n * (jnp.dtype(xf.dtype).itemsize
                          + jnp.dtype(tf.dtype).itemsize
                          + jnp.dtype(out_dtype).itemsize)
    cost = pl.CostEstimate(flops=12 * n, transcendentals=3 * n,
                           bytes_accessed=bytes_accessed)

    kernel = functools.partial(_qfl_kernel, beta=float(beta))

    return pl.pallas_call(
        kernel,
        out_shape=jax.ShapeDtypeStruct((rows, lane), out_dtype),
        grid_spec=pltpu.PrefetchScalarGridSpec(
            num_scalar_prefetch=0,
            grid=(grid,),
            in_specs=[
                # scalar inv_norm lives in SMEM, untiled
                pl.BlockSpec(memory_space=pltpu.SMEM),
                pl.BlockSpec((tr, lane), lambda i: (i, 0)),
                pl.BlockSpec((tr, lane), lambda i: (i, 0)),
            ],
            out_specs=pl.BlockSpec((tr, lane), lambda i: (i, 0)),
        ),
        compiler_params=pltpu.CompilerParams(
            dimension_semantics=("parallel",),
            vmem_limit_bytes=_VMEM_LIMIT_BYTES,
        ),
        cost_estimate=cost,
    )(inv_norm, xf, tf)


def quality_focal_loss(x, target, pos_normalizer=1.0, beta=2.0):
    """Pallas TPU implementation of QualityFocalLoss.forward (use_sigmoid=True).

    x:      [B, M, C] logits
    target: [B, M, C] soft targets in [0, 1]
    returns [B, M, C] per-element loss (same dtype as x)
    """
    orig_shape = x.shape
    out_dtype = x.dtype
    total = 1
    for s in orig_shape:
        total *= int(s)

    # Scalar work hoisted out of the kernel: inv_norm = 1 / clamp(pn, min=1).
    pn = jnp.asarray(pos_normalizer, dtype=jnp.float32).reshape(())
    inv_norm = (1.0 / jnp.maximum(pn, 1.0)).reshape((1,))

    xf = x.reshape((-1,))
    tf = target.reshape((-1,))

    # Fast path: pick the widest lane (>=128, lane-dense) that divides total.
    # Reshape is free -> zero extra HBM traffic outside the kernel.
    lane = None
    for cand in (512, 256, 128):
        if total % cand == 0:
            lane = cand
            break

    if lane is not None:
        rows = total // lane
        out = _run_kernel(xf.reshape((rows, lane)), tf.reshape((rows, lane)),
                          inv_norm, beta, out_dtype)
        return out.reshape(orig_shape)

    # Ragged fallback: pad to the next lane multiple (< 512 extra elements of
    # work, but the pad/slice do copy the arrays once). Hit only for totals
    # not divisible by 128; large bevdet workloads normally take the fast path.
    lane = 512
    rows = pl.cdiv(total, lane)
    pad = rows * lane - total
    xp = jnp.pad(xf, (0, pad)).reshape((rows, lane))
    tp = jnp.pad(tf, (0, pad)).reshape((rows, lane))
    out = _run_kernel(xp, tp, inv_norm, beta, out_dtype)
    return out.reshape((-1,))[:total].reshape(orig_shape)


def _reference(x, target, pos_normalizer=1.0, beta=2.0):
    x = x.astype(jnp.float32)
    target = target.astype(jnp.float32)
    pred_sigmoid = jax.nn.sigmoid(x)
    scale = jnp.abs(pred_sigmoid - target) ** beta
    bce = jnp.maximum(x, 0.0) - x * target + jnp.log1p(jnp.exp(-jnp.abs(x)))
    return bce * scale / jnp.maximum(jnp.asarray(pos_normalizer, jnp.float32), 1.0)


if __name__ == "__main__":
    key = jax.random.PRNGKey(0)
    k1, k2, k3, k4, k5, k6 = jax.random.split(key, 6)

    # Loose-ish tolerances because the kernel uses the EUP approx reciprocal.
    ATOL, RTOL = 5e-3, 2e-2

    # 1) Realistic small bevdet case: C=10 -> ragged total, exercises the
    #    pad-fallback path.
    B, M, C = 2, 16, 10
    x = jax.random.normal(k1, (B, M, C), dtype=jnp.float32) * 2.0
    target = jax.nn.sigmoid(jax.random.normal(k2, (B, M, C), dtype=jnp.float32))
    out = jax.block_until_ready(quality_focal_loss(x, target, 3.5, beta=2.0))
    ref = _reference(x, target, 3.5, beta=2.0)
    assert out.shape == (B, M, C)
    assert jnp.allclose(out, ref, atol=ATOL, rtol=RTOL), "mismatch (ragged C=10)"

    # 2) Aligned case -> zero-copy fast path, 2-step parallel grid.
    B2, M2, C2 = 2, 64, 128
    x2 = jax.random.normal(k3, (B2, M2, C2), dtype=jnp.float32) * 2.0
    t2 = jax.nn.sigmoid(jax.random.normal(k4, (B2, M2, C2), dtype=jnp.float32))
    out2 = jax.block_until_ready(quality_focal_loss(x2, t2, 0.5, beta=2.0))
    ref2 = _reference(x2, t2, 0.5, beta=2.0)
    assert out2.shape == (B2, M2, C2)
    assert jnp.allclose(out2, ref2, atol=ATOL, rtol=RTOL), "mismatch (aligned C=128)"

    # 3) Fast path with a partial last row-block (rows=30, tr=16 -> blocks 16+14).
    B3, M3, C3 = 2, 60, 128
    x3 = jax.random.normal(k5, (B3, M3, C3), dtype=jnp.float32) * 2.0
    t3 = jax.nn.sigmoid(jax.random.normal(k6, (B3, M3, C3), dtype=jnp.float32))
    out3 = jax.block_until_ready(quality_focal_loss(x3, t3, 2.0, beta=2.0))
    ref3 = _reference(x3, t3, 2.0, beta=2.0)
    assert out3.shape == (B3, M3, C3)
    assert jnp.allclose(out3, ref3, atol=ATOL, rtol=RTOL), "mismatch (partial block)"

    # 4) bf16 in / bf16 out (dtype preserved end-to-end, f32 compute inside).
    xb = x2.astype(jnp.bfloat16)
    tb = t2.astype(jnp.bfloat16)
    outb = jax.block_until_ready(quality_focal_loss(xb, tb, 1.0, beta=2.0))
    refb = _reference(xb, tb, 1.0, beta=2.0)
    assert outb.dtype == jnp.bfloat16
    assert jnp.allclose(outb.astype(jnp.float32), refb, atol=1e-2, rtol=5e-2), \
        "mismatch (bf16)"

    print("KERNEL_OK")
</pallas_src>

<mosaic_0001>
module attributes {stable_mosaic.version = 11 : i64} {
  func.func @_qfl_kernel(%arg0: i32, %arg1: memref<1xf32, #tpu.memory_space<smem>>, %arg2: memref<1x512xf32, #tpu.memory_space<vmem>>, %arg3: memref<1x512xf32, #tpu.memory_space<vmem>>, %arg4: memref<1x512xf32, #tpu.memory_space<vmem>>) attributes {dimension_semantics = [#tpu.dimension_semantics<parallel>], iteration_bounds = array<i64: 1>, scalar_prefetch = 0 : i64, scratch_operands = 0 : i64, tpu.core_type = #tpu.core_type<tc>, window_params = [{transform_indices = @transform_0, window_bounds = array<i64: 1>}, {transform_indices = @transform_1, window_bounds = array<i64: 1, 512>}, {transform_indices = @transform_2, window_bounds = array<i64: 1, 512>}, {transform_indices = @transform_3, window_bounds = array<i64: 1, 512>}]} {
    %c0 = arith.constant 0 : index
    %c0_0 = arith.constant 0 : index
    %0 = vector.load %arg2[%c0, %c0_0] : memref<1x512xf32, #tpu.memory_space<vmem>>, vector<1x512xf32>
    %c0_1 = arith.constant 0 : index
    %c0_2 = arith.constant 0 : index
    %1 = vector.load %arg3[%c0_1, %c0_2] : memref<1x512xf32, #tpu.memory_space<vmem>>, vector<1x512xf32>
    %2 = math.absf %0 : vector<1x512xf32>
    %cst = arith.constant 0.000000e+00 : f32
    %3 = vector.broadcast %cst : f32 to vector<1x512xf32>
    %4 = arith.subf %3, %2 : vector<1x512xf32>
    %5 = math.exp %4 : vector<1x512xf32>
    %cst_3 = arith.constant 1.000000e+00 : f32
    %6 = vector.broadcast %cst_3 : f32 to vector<1x512xf32>
    %7 = arith.addf %6, %5 : vector<1x512xf32>
    %8 = tpu.reciprocal %7 {approx = true} : vector<1x512xf32> -> vector<1x512xf32>
    %cst_4 = arith.constant 0.000000e+00 : f32
    %9 = vector.broadcast %cst_4 : f32 to vector<1x512xf32>
    %10 = arith.cmpf oge, %0, %9 : vector<1x512xf32>
    %11 = arith.mulf %5, %8 : vector<1x512xf32>
    %12 = arith.select %10, %8, %11 : vector<1x512xi1>, vector<1x512xf32>
    %13 = arith.subf %12, %1 : vector<1x512xf32>
    %14 = arith.mulf %13, %13 : vector<1x512xf32>
    %cst_5 = arith.constant 0.000000e+00 : f32
    %15 = vector.broadcast %cst_5 : f32 to vector<1x512xf32>
    %16 = arith.maximumf %0, %15 : vector<1x512xf32>
    %17 = arith.mulf %0, %1 : vector<1x512xf32>
    %18 = arith.subf %16, %17 : vector<1x512xf32>
    %19 = math.log1p %5 : vector<1x512xf32>
    %20 = arith.addf %18, %19 : vector<1x512xf32>
    %21 = arith.mulf %20, %14 : vector<1x512xf32>
    %c0_6 = arith.constant 0 : index
    %22 = memref.load %arg1[%c0_6] : memref<1xf32, #tpu.memory_space<smem>>
    %23 = vector.broadcast %22 : f32 to vector<1x512xf32>
    %24 = arith.mulf %21, %23 : vector<1x512xf32>
    %c0_7 = arith.constant 0 : index
    %c0_8 = arith.constant 0 : index
    %25 = vector.load %arg4[%c0_7, %c0_8] : memref<1x512xf32, #tpu.memory_space<vmem>>, vector<1x512xf32>
    tpu.vector_store %arg4[%c0_7, %c0_8], %24 {strides = array<i32>} : memref<1x512xf32, #tpu.memory_space<vmem>>, vector<1x512xf32>,
    return
  }
  func.func @transform_0(%arg0: i32) -> i32 {
    %c0_i32 = arith.constant 0 : i32
    %c0_i32_0 = arith.constant 0 : i32
    return %c0_i32 : i32
  }
  func.func @transform_1(%arg0: i32) -> (i32, i32) {
    %c0_i32 = arith.constant 0 : i32
    %c0_i32_0 = arith.constant 0 : i32
    return %arg0, %c0_i32 : i32, i32
  }
  func.func @transform_2(%arg0: i32) -> (i32, i32) {
    %c0_i32 = arith.constant 0 : i32
    %c0_i32_0 = arith.constant 0 : i32
    return %arg0, %c0_i32 : i32, i32
  }
  func.func @transform_3(%arg0: i32) -> (i32, i32) {
    %c0_i32 = arith.constant 0 : i32
    %c0_i32_0 = arith.constant 0 : i32
    return %arg0, %c0_i32 : i32, i32
  }
}

</mosaic_0001>

<llo_original>
// kernel: tpu_custom_call.1
$region0: #{tpu_custom_call.1}
  #allocation0 [shape = 'u32[]', space=smem, size = 0x4, offset = 0x4, fixed_abs, tag = 'smem constant byte address 0x4 - core index']
  #allocation1 [shape = 'u32[144,128]{1,0:T(1,128)}', space=vmem, size = 0x12000, scoped, tag = 'internal scratch']
  #allocation2 [shape = 'f32[1]{0:T(128)S(6)}', space=smem, size = 0x200, scoped, tag = 'scoped memory for tpu_custom_call.1']
  %s0 = inlined_call_operand.<no memory space> [shape: f32[1], index: 0, kind: input, shape index: {}]
  %s1 = inlined_call_operand.hbm [shape: f32[1,512], index: 1, kind: input, shape index: {}]
  %s2 = inlined_call_operand.hbm [shape: f32[1,512], index: 2, kind: input, shape index: {}]
  %s3 = inlined_call_operand.hbm [shape: f32[1,512], index: 3, kind: output, shape index: {}]
  %s4 = sld [smem:[#allocation0]]
  $region30: #{tpu_custom_call.1} parent=0
    _
  %s6 = ssub.s32 1, %s4
  %s7 = scalar_select 0, %s6, %s4
  %8 = sst [smem:[#allocation2]] %s0
  $region1: #{tpu_custom_call.1} parent=0
    #allocation3 [shape = 'u8[2048]{0}', space=vmem, size = 0x800, scoped, tag = 'input window, operand 1, single buffered']
    #allocation4 [shape = 's32[1]{0}', space=sflag, size = 0x4, scoped, tag = 'scoped memory for tpu_custom_call.1']
    #allocation5 [shape = 's32[1]{0}', space=sflag, size = 0x4, scoped, tag = 'scoped memory for tpu_custom_call.1']
    #allocation6 [shape = 'u8[2048]{0}', space=vmem, size = 0x800, scoped, tag = 'input window, operand 2, single buffered']
    #allocation7 [shape = 's32[1]{0}', space=sflag, size = 0x4, scoped, tag = 'scoped memory for tpu_custom_call.1']
    #allocation8 [shape = 'u8[2048]{0}', space=vmem, size = 0x800, scoped, tag = 'output window, operand 0, single buffered']
    %9 = vsyncpa [#allocation4], 0
    %10 = vsyncpa [#allocation7], 0
    %11 = vsyncpa [#allocation5], 0
    // Predicated region
    $region2: #{tpu_custom_call.1} parent=1 // pred_check
      _
    $region3: #{tpu_custom_call.1} parent=1 // pred_check_branch
      %13 = sbr.rel (0) target = $region5
    $region4: #{tpu_custom_call.1} parent=1 // pred_region
      _
    $region5: #{tpu_custom_call.1} parent=1 // pred_fallthru
      _
    // Predicated region
    $region6: #{tpu_custom_call.1} parent=1 // pred_check
      _
    $region7: #{tpu_custom_call.1} parent=1 // pred_check_branch
      %15 = sbr.rel (0) target = $region9
    $region8: #{tpu_custom_call.1} parent=1 // pred_region
      %s17 = ssub.s32 64, 64
      %18 = vsyncadd [#allocation4], %s17
      %s20 = sshll.u32 [#allocation3], 4
      %s21 = int_to_ptr.vmem [resolvable:$true] %s20
      %23 = dma.hbm_to_vmem [thread:$0]  %s1, 64, %s21, [#allocation4]
    $region9: #{tpu_custom_call.1} parent=1 // pred_fallthru
      _
    // Predicated region
    $region10: #{tpu_custom_call.1} parent=1 // pred_check
      _
    $region11: #{tpu_custom_call.1} parent=1 // pred_check_branch
      %25 = sbr.rel (0) target = $region13
    $region12: #{tpu_custom_call.1} parent=1 // pred_region
      %s27 = ssub.s32 64, 64
      %28 = vsyncadd [#allocation7], %s27
      %s30 = sshll.u32 [#allocation6], 4
      %s31 = int_to_ptr.vmem [resolvable:$true] %s30
      %33 = dma.hbm_to_vmem [thread:$0]  %s2, 64, %s31, [#allocation7]
    $region13: #{tpu_custom_call.1} parent=1 // pred_fallthru
      _
    // Predicated region
    $region14: #{tpu_custom_call.1} parent=1 // pred_check
      _
    $region15: #{tpu_custom_call.1} parent=1 // pred_check_branch
      %35 = sbr.rel (0) target = $region17
    $region16: #{tpu_custom_call.1} parent=1 // pred_region
      %36 = dma.done [#allocation4], 64
    $region17: #{tpu_custom_call.1} parent=1 // pred_fallthru
      _
    // Predicated region
    $region18: #{tpu_custom_call.1} parent=1 // pred_check
      _
    $region19: #{tpu_custom_call.1} parent=1 // pred_check_branch
      %38 = sbr.rel (0) target = $region21
    $region20: #{tpu_custom_call.1} parent=1 // pred_region
      %39 = dma.done [#allocation7], 64
    $region21: #{tpu_custom_call.1} parent=1 // pred_fallthru
      _
    %v40 = vld [vmem:[#allocation3] sm:$0xf]
    %v41 = vld [vmem:[#allocation6] sm:$0xf]
    %v42 = vand.u32 2147483647, %v40
    %v43 = vsub.f32 0.0, %v42
    %v44 = vmul.f32 %v43, 1.442695
    %v45 = vpow.pop %v44
    %v46 = vadd.f32 %v45, 1.0
    %v47 = vrcp.pop %v46
    %vm48 = vcmp.ge.f32.partialorder %v40, 0.0
    %v49 = vmul.f32 %v45, %v47
    %v50 = vsel %vm48, %v47, %v49
    %v51 = vsub.f32 %v50, %v41
    %v52 = vmul.f32 %v51, %v51
    %v53 = vmax.f32 %v40, 0.0
    %v54 = vmul.f32 %v40, %v41
    %v55 = vsub.f32 %v53, %v54
    %v56 = vadd.f32 %v45, 1.0
    %v57 = vlog2.pop %v56
    %v58 = vmul.f32 %v57, 0.6931472
    %v59 = vmul.f32 -0.5, %v45
    %v60 = vadd.f32 %v59, 1.0
    %v61 = vmul.f32 %v60, %v45
    %v62 = vand.u32 2147483647, %v45
    %vm63 = vcmp.lt.f32.partialorder %v62, 0.0004427343
    %v64 = vsel %vm63, %v61, %v58
    %v65 = vadd.f32 %v55, %v64
    %v66 = vmul.f32 %v65, %v52
    %s67 = sld [smem:[#allocation2]]
    %v68 = vstv %s67
    %v69 = vmul.f32 %v66, %v68
    %v70 = vlaneseq
    %vm71 = vcmp.ge.s32.totalorder %v70, 0
    %vm72 = vcmp.lt.s32.totalorder %v70, 512
    %vm73 = vmand %vm71, %vm72
    %74 = vst.msk [vmem:[#allocation8] sm:$0xf] %vm73, %v69
    // Predicated region
    $region22: #{tpu_custom_call.1} parent=1 // pred_check
      _
    $region23: #{tpu_custom_call.1} parent=1 // pred_check_branch
      %76 = sbr.rel (0) target = $region25
    $region24: #{tpu_custom_call.1} parent=1 // pred_region
      %s78 = ssub.s32 64, 64
      %79 = vsyncadd [#allocation5], %s78
      %s81 = sshll.u32 [#allocation8], 4
      %s82 = int_to_ptr.vmem [resolvable:$true] %s81
      %84 = dma.vmem_to_hbm [thread:$0]  %s82, 64, %s3, [#allocation5]
    $region25: #{tpu_custom_call.1} parent=1 // pred_fallthru
      _
    // Predicated region
    $region26: #{tpu_custom_call.1} parent=1 // pred_check
      _
    $region27: #{tpu_custom_call.1} parent=1 // pred_check_branch
      %86 = sbr.rel (0) target = $region29
    $region28: #{tpu_custom_call.1} parent=1 // pred_region
      %87 = dma.done [#allocation5], 64
    $region29: #{tpu_custom_call.1} parent=1 // pred_fallthru
      _
    %88 = vsyncpa [#allocation4], 1
    %89 = vsyncpa [#allocation7], 1
    %90 = vsyncpa [#allocation5], 1

</llo_original>
